<compile_context>
chip_gen: v7x
topology: tpu7x:2x2x1
jax: 0.10.0
libtpu: 0.0.40
codegen_flags: <defaults>
</compile_context>

<pallas_src>
import jax
import jax.numpy as jnp
from jax.experimental import pallas as pl
from jax.experimental.pallas import tpu as pltpu


def net_kernel(x_ref, w1_ref, b1_ref, w2_ref, b2_ref, o_ref):
    """x_ref/o_ref: (tile_rows, lanes) f32 in VMEM.
    w1/b1/w2: (H,) f32 in SMEM, b2: (1,) f32 in SMEM."""
    x = x_ref[...]                      # (tile_rows, lanes) f32
    acc = jnp.zeros_like(x)
    # Fused elementwise form of Linear(1,20) -> ReLU -> Linear(20,1):
    #   y = b2 + sum_j w2[j] * relu(w1[j] * x + b1[j])
    # Statically unrolled over the H=20 hidden units; each term is a
    # scalar(SMEM) * vector broadcast, so this is pure VPU work.
    for j in range(w1_ref.shape[0]):
        acc = acc + w2_ref[j] * jnp.maximum(w1_ref[j] * x + b1_ref[j], 0.0)
    o_ref[...] = (acc + b2_ref[0]).astype(o_ref.dtype)


def net_forward(x, w1, b1, w2, b2, *, lanes=1024, tile_rows=256):
    """x: (N, 1) or (N,) float32.  Returns (N, 1) float32.

    Weights follow the math y = relu(x @ w1 + b1) @ w2 + b2 with
    w1: (1, H), b1: (H,), w2: (H, 1), b2: (1,) (i.e. torch weights transposed).
    """
    n = x.shape[0]
    x_flat = x.reshape(-1).astype(jnp.float32)

    # Lane-dense slab: batch along the 128-lane axis.
    rows = -(-n // lanes)                       # cdiv
    if rows <= tile_rows:
        tile_rows = rows                        # single block (full rows dim)
    else:
        rows = -(-rows // tile_rows) * tile_rows  # round rows up to tile mult
    padded = rows * lanes
    if padded != n:
        x_flat = jnp.pad(x_flat, (0, padded - n))
    x2 = x_flat.reshape(rows, lanes)

    # Flat 1-D params -> SMEM (avoids 2-D SMEM padding blowup).
    w1_s = w1.reshape(-1).astype(jnp.float32)   # (H,)
    b1_s = b1.reshape(-1).astype(jnp.float32)   # (H,)
    w2_s = w2.reshape(-1).astype(jnp.float32)   # (H,)
    b2_s = b2.reshape(-1).astype(jnp.float32)   # (1,)

    grid = (rows // tile_rows,)

    y2 = pl.pallas_call(
        net_kernel,
        out_shape=jax.ShapeDtypeStruct((rows, lanes), jnp.float32),
        grid_spec=pltpu.PrefetchScalarGridSpec(
            num_scalar_prefetch=0,
            grid=grid,
            in_specs=[
                pl.BlockSpec((tile_rows, lanes), lambda i: (i, 0)),        # x
                pl.BlockSpec(memory_space=pltpu.MemorySpace.SMEM),         # w1
                pl.BlockSpec(memory_space=pltpu.MemorySpace.SMEM),         # b1
                pl.BlockSpec(memory_space=pltpu.MemorySpace.SMEM),         # w2
                pl.BlockSpec(memory_space=pltpu.MemorySpace.SMEM),         # b2
            ],
            out_specs=pl.BlockSpec((tile_rows, lanes), lambda i: (i, 0)),
        ),
        compiler_params=pltpu.CompilerParams(
            dimension_semantics=("parallel",),          # v7x: shard over 2 TCs
            vmem_limit_bytes=32 * 1024 * 1024,          # safe on v5e/v6e/v7x
        ),
    )(x2, w1_s, b1_s, w2_s, b2_s)

    return y2.reshape(-1)[:n].reshape(n, 1)


def init_params(key, in_dim=1, hidden=20, out_dim=1):
    """Deterministic init mimicking torch.nn.Linear default
    (U[-1/sqrt(fan_in), 1/sqrt(fan_in)]), stored as (in, out) so the math is
    y = relu(x @ w1 + b1) @ w2 + b2 (== x @ W_torch.T + b)."""
    k1, k2, k3, k4 = jax.random.split(key, 4)
    bound1 = 1.0 / jnp.sqrt(in_dim)
    bound2 = 1.0 / jnp.sqrt(hidden)
    w1 = jax.random.uniform(k1, (in_dim, hidden), jnp.float32, -bound1, bound1)
    b1 = jax.random.uniform(k2, (hidden,), jnp.float32, -bound1, bound1)
    w2 = jax.random.uniform(k3, (hidden, out_dim), jnp.float32, -bound2, bound2)
    b2 = jax.random.uniform(k4, (out_dim,), jnp.float32, -bound2, bound2)
    return w1, b1, w2, b2


if __name__ == "__main__":
    key = jax.random.PRNGKey(0)
    w1, b1, w2, b2 = init_params(key)

    # Same input as the PyTorch script: torch.unsqueeze(torch.linspace(-1,1,1500), 1)
    N = 1500
    x = jnp.linspace(-1.0, 1.0, N, dtype=jnp.float32).reshape(N, 1)

    y = net_forward(x, w1, b1, w2, b2)
    y = jax.block_until_ready(y)

    # Pure-JAX reference (the original two-matmul form).
    ref = jnp.dot(jnp.maximum(jnp.dot(x, w1) + b1[None, :], 0.0), w2) + b2[None, :]
    assert y.shape == (N, 1)
    assert jnp.allclose(y, ref, atol=1e-5, rtol=1e-4), float(jnp.max(jnp.abs(y - ref)))

    print("KERNEL_OK")
</pallas_src>

<mosaic_0001>
module attributes {stable_mosaic.version = 11 : i64} {
  func.func @net_kernel(%arg0: i32, %arg1: memref<2x1024xf32, #tpu.memory_space<vmem>>, %arg2: memref<20xf32, #tpu.memory_space<smem>>, %arg3: memref<20xf32, #tpu.memory_space<smem>>, %arg4: memref<20xf32, #tpu.memory_space<smem>>, %arg5: memref<1xf32, #tpu.memory_space<smem>>, %arg6: memref<2x1024xf32, #tpu.memory_space<vmem>>) attributes {dimension_semantics = [#tpu.dimension_semantics<parallel>], iteration_bounds = array<i64: 1>, scalar_prefetch = 0 : i64, scratch_operands = 0 : i64, tpu.core_type = #tpu.core_type<tc>, window_params = [{transform_indices = @transform_0, window_bounds = array<i64: 2, 1024>}, {transform_indices = @transform_1, window_bounds = array<i64: 20>}, {transform_indices = @transform_2, window_bounds = array<i64: 20>}, {transform_indices = @transform_3, window_bounds = array<i64: 20>}, {transform_indices = @transform_4, window_bounds = array<i64: 1>}, {transform_indices = @transform_5, window_bounds = array<i64: 2, 1024>}]} {
    %c0 = arith.constant 0 : index
    %c0_0 = arith.constant 0 : index
    %0 = vector.load %arg1[%c0, %c0_0] : memref<2x1024xf32, #tpu.memory_space<vmem>>, vector<2x1024xf32>
    %cst = arith.constant 0.000000e+00 : f32
    %1 = vector.broadcast %cst : f32 to vector<2x1024xf32>
    %c0_1 = arith.constant 0 : index
    %2 = memref.load %arg4[%c0_1] : memref<20xf32, #tpu.memory_space<smem>>
    %c0_2 = arith.constant 0 : index
    %3 = memref.load %arg2[%c0_2] : memref<20xf32, #tpu.memory_space<smem>>
    %4 = vector.broadcast %3 : f32 to vector<2x1024xf32>
    %5 = arith.mulf %4, %0 : vector<2x1024xf32>
    %c0_3 = arith.constant 0 : index
    %6 = memref.load %arg3[%c0_3] : memref<20xf32, #tpu.memory_space<smem>>
    %7 = vector.broadcast %6 : f32 to vector<2x1024xf32>
    %8 = arith.addf %5, %7 : vector<2x1024xf32>
    %cst_4 = arith.constant 0.000000e+00 : f32
    %9 = vector.broadcast %cst_4 : f32 to vector<2x1024xf32>
    %10 = arith.maximumf %8, %9 : vector<2x1024xf32>
    %11 = vector.broadcast %2 : f32 to vector<2x1024xf32>
    %12 = arith.mulf %11, %10 : vector<2x1024xf32>
    %13 = arith.addf %1, %12 : vector<2x1024xf32>
    %c1 = arith.constant 1 : index
    %14 = memref.load %arg4[%c1] : memref<20xf32, #tpu.memory_space<smem>>
    %c1_5 = arith.constant 1 : index
    %15 = memref.load %arg2[%c1_5] : memref<20xf32, #tpu.memory_space<smem>>
    %16 = vector.broadcast %15 : f32 to vector<2x1024xf32>
    %17 = arith.mulf %16, %0 : vector<2x1024xf32>
    %c1_6 = arith.constant 1 : index
    %18 = memref.load %arg3[%c1_6] : memref<20xf32, #tpu.memory_space<smem>>
    %19 = vector.broadcast %18 : f32 to vector<2x1024xf32>
    %20 = arith.addf %17, %19 : vector<2x1024xf32>
    %cst_7 = arith.constant 0.000000e+00 : f32
    %21 = vector.broadcast %cst_7 : f32 to vector<2x1024xf32>
    %22 = arith.maximumf %20, %21 : vector<2x1024xf32>
    %23 = vector.broadcast %14 : f32 to vector<2x1024xf32>
    %24 = arith.mulf %23, %22 : vector<2x1024xf32>
    %25 = arith.addf %13, %24 : vector<2x1024xf32>
    %c2 = arith.constant 2 : index
    %26 = memref.load %arg4[%c2] : memref<20xf32, #tpu.memory_space<smem>>
    %c2_8 = arith.constant 2 : index
    %27 = memref.load %arg2[%c2_8] : memref<20xf32, #tpu.memory_space<smem>>
    %28 = vector.broadcast %27 : f32 to vector<2x1024xf32>
    %29 = arith.mulf %28, %0 : vector<2x1024xf32>
    %c2_9 = arith.constant 2 : index
    %30 = memref.load %arg3[%c2_9] : memref<20xf32, #tpu.memory_space<smem>>
    %31 = vector.broadcast %30 : f32 to vector<2x1024xf32>
    %32 = arith.addf %29, %31 : vector<2x1024xf32>
    %cst_10 = arith.constant 0.000000e+00 : f32
    %33 = vector.broadcast %cst_10 : f32 to vector<2x1024xf32>
    %34 = arith.maximumf %32, %33 : vector<2x1024xf32>
    %35 = vector.broadcast %26 : f32 to vector<2x1024xf32>
    %36 = arith.mulf %35, %34 : vector<2x1024xf32>
    %37 = arith.addf %25, %36 : vector<2x1024xf32>
    %c3 = arith.constant 3 : index
    %38 = memref.load %arg4[%c3] : memref<20xf32, #tpu.memory_space<smem>>
    %c3_11 = arith.constant 3 : index
    %39 = memref.load %arg2[%c3_11] : memref<20xf32, #tpu.memory_space<smem>>
    %40 = vector.broadcast %39 : f32 to vector<2x1024xf32>
    %41 = arith.mulf %40, %0 : vector<2x1024xf32>
    %c3_12 = arith.constant 3 : index
    %42 = memref.load %arg3[%c3_12] : memref<20xf32, #tpu.memory_space<smem>>
    %43 = vector.broadcast %42 : f32 to vector<2x1024xf32>
    %44 = arith.addf %41, %43 : vector<2x1024xf32>
    %cst_13 = arith.constant 0.000000e+00 : f32
    %45 = vector.broadcast %cst_13 : f32 to vector<2x1024xf32>
    %46 = arith.maximumf %44, %45 : vector<2x1024xf32>
    %47 = vector.broadcast %38 : f32 to vector<2x1024xf32>
    %48 = arith.mulf %47, %46 : vector<2x1024xf32>
    %49 = arith.addf %37, %48 : vector<2x1024xf32>
    %c4 = arith.constant 4 : index
    %50 = memref.load %arg4[%c4] : memref<20xf32, #tpu.memory_space<smem>>
    %c4_14 = arith.constant 4 : index
    %51 = memref.load %arg2[%c4_14] : memref<20xf32, #tpu.memory_space<smem>>
    %52 = vector.broadcast %51 : f32 to vector<2x1024xf32>
    %53 = arith.mulf %52, %0 : vector<2x1024xf32>
    %c4_15 = arith.constant 4 : index
    %54 = memref.load %arg3[%c4_15] : memref<20xf32, #tpu.memory_space<smem>>
    %55 = vector.broadcast %54 : f32 to vector<2x1024xf32>
    %56 = arith.addf %53, %55 : vector<2x1024xf32>
    %cst_16 = arith.constant 0.000000e+00 : f32
    %57 = vector.broadcast %cst_16 : f32 to vector<2x1024xf32>
    %58 = arith.maximumf %56, %57 : vector<2x1024xf32>
    %59 = vector.broadcast %50 : f32 to vector<2x1024xf32>
    %60 = arith.mulf %59, %58 : vector<2x1024xf32>
    %61 = arith.addf %49, %60 : vector<2x1024xf32>
    %c5 = arith.constant 5 : index
    %62 = memref.load %arg4[%c5] : memref<20xf32, #tpu.memory_space<smem>>
    %c5_17 = arith.constant 5 : index
    %63 = memref.load %arg2[%c5_17] : memref<20xf32, #tpu.memory_space<smem>>
    %64 = vector.broadcast %63 : f32 to vector<2x1024xf32>
    %65 = arith.mulf %64, %0 : vector<2x1024xf32>
    %c5_18 = arith.constant 5 : index
    %66 = memref.load %arg3[%c5_18] : memref<20xf32, #tpu.memory_space<smem>>
    %67 = vector.broadcast %66 : f32 to vector<2x1024xf32>
    %68 = arith.addf %65, %67 : vector<2x1024xf32>
    %cst_19 = arith.constant 0.000000e+00 : f32
    %69 = vector.broadcast %cst_19 : f32 to vector<2x1024xf32>
    %70 = arith.maximumf %68, %69 : vector<2x1024xf32>
    %71 = vector.broadcast %62 : f32 to vector<2x1024xf32>
    %72 = arith.mulf %71, %70 : vector<2x1024xf32>
    %73 = arith.addf %61, %72 : vector<2x1024xf32>
    %c6 = arith.constant 6 : index
    %74 = memref.load %arg4[%c6] : memref<20xf32, #tpu.memory_space<smem>>
    %c6_20 = arith.constant 6 : index
    %75 = memref.load %arg2[%c6_20] : memref<20xf32, #tpu.memory_space<smem>>
    %76 = vector.broadcast %75 : f32 to vector<2x1024xf32>
    %77 = arith.mulf %76, %0 : vector<2x1024xf32>
    %c6_21 = arith.constant 6 : index
    %78 = memref.load %arg3[%c6_21] : memref<20xf32, #tpu.memory_space<smem>>
    %79 = vector.broadcast %78 : f32 to vector<2x1024xf32>
    %80 = arith.addf %77, %79 : vector<2x1024xf32>
    %cst_22 = arith.constant 0.000000e+00 : f32
    %81 = vector.broadcast %cst_22 : f32 to vector<2x1024xf32>
    %82 = arith.maximumf %80, %81 : vector<2x1024xf32>
    %83 = vector.broadcast %74 : f32 to vector<2x1024xf32>
    %84 = arith.mulf %83, %82 : vector<2x1024xf32>
    %85 = arith.addf %73, %84 : vector<2x1024xf32>
    %c7 = arith.constant 7 : index
    %86 = memref.load %arg4[%c7] : memref<20xf32, #tpu.memory_space<smem>>
    %c7_23 = arith.constant 7 : index
    %87 = memref.load %arg2[%c7_23] : memref<20xf32, #tpu.memory_space<smem>>
    %88 = vector.broadcast %87 : f32 to vector<2x1024xf32>
    %89 = arith.mulf %88, %0 : vector<2x1024xf32>
    %c7_24 = arith.constant 7 : index
    %90 = memref.load %arg3[%c7_24] : memref<20xf32, #tpu.memory_space<smem>>
    %91 = vector.broadcast %90 : f32 to vector<2x1024xf32>
    %92 = arith.addf %89, %91 : vector<2x1024xf32>
    %cst_25 = arith.constant 0.000000e+00 : f32
    %93 = vector.broadcast %cst_25 : f32 to vector<2x1024xf32>
    %94 = arith.maximumf %92, %93 : vector<2x1024xf32>
    %95 = vector.broadcast %86 : f32 to vector<2x1024xf32>
    %96 = arith.mulf %95, %94 : vector<2x1024xf32>
    %97 = arith.addf %85, %96 : vector<2x1024xf32>
    %c8 = arith.constant 8 : index
    %98 = memref.load %arg4[%c8] : memref<20xf32, #tpu.memory_space<smem>>
    %c8_26 = arith.constant 8 : index
    %99 = memref.load %arg2[%c8_26] : memref<20xf32, #tpu.memory_space<smem>>
    %100 = vector.broadcast %99 : f32 to vector<2x1024xf32>
    %101 = arith.mulf %100, %0 : vector<2x1024xf32>
    %c8_27 = arith.constant 8 : index
    %102 = memref.load %arg3[%c8_27] : memref<20xf32, #tpu.memory_space<smem>>
    %103 = vector.broadcast %102 : f32 to vector<2x1024xf32>
    %104 = arith.addf %101, %103 : vector<2x1024xf32>
    %cst_28 = arith.constant 0.000000e+00 : f32
    %105 = vector.broadcast %cst_28 : f32 to vector<2x1024xf32>
    %106 = arith.maximumf %104, %105 : vector<2x1024xf32>
    %107 = vector.broadcast %98 : f32 to vector<2x1024xf32>
    %108 = arith.mulf %107, %106 : vector<2x1024xf32>
    %109 = arith.addf %97, %108 : vector<2x1024xf32>
    %c9 = arith.constant 9 : index
    %110 = memref.load %arg4[%c9] : memref<20xf32, #tpu.memory_space<smem>>
    %c9_29 = arith.constant 9 : index
    %111 = memref.load %arg2[%c9_29] : memref<20xf32, #tpu.memory_space<smem>>
    %112 = vector.broadcast %111 : f32 to vector<2x1024xf32>
    %113 = arith.mulf %112, %0 : vector<2x1024xf32>
    %c9_30 = arith.constant 9 : index
    %114 = memref.load %arg3[%c9_30] : memref<20xf32, #tpu.memory_space<smem>>
    %115 = vector.broadcast %114 : f32 to vector<2x1024xf32>
    %116 = arith.addf %113, %115 : vector<2x1024xf32>
    %cst_31 = arith.constant 0.000000e+00 : f32
    %117 = vector.broadcast %cst_31 : f32 to vector<2x1024xf32>
    %118 = arith.maximumf %116, %117 : vector<2x1024xf32>
    %119 = vector.broadcast %110 : f32 to vector<2x1024xf32>
    %120 = arith.mulf %119, %118 : vector<2x1024xf32>
    %121 = arith.addf %109, %120 : vector<2x1024xf32>
    %c10 = arith.constant 10 : index
    %122 = memref.load %arg4[%c10] : memref<20xf32, #tpu.memory_space<smem>>
    %c10_32 = arith.constant 10 : index
    %123 = memref.load %arg2[%c10_32] : memref<20xf32, #tpu.memory_space<smem>>
    %124 = vector.broadcast %123 : f32 to vector<2x1024xf32>
    %125 = arith.mulf %124, %0 : vector<2x1024xf32>
    %c10_33 = arith.constant 10 : index
    %126 = memref.load %arg3[%c10_33] : memref<20xf32, #tpu.memory_space<smem>>
    %127 = vector.broadcast %126 : f32 to vector<2x1024xf32>
    %128 = arith.addf %125, %127 : vector<2x1024xf32>
    %cst_34 = arith.constant 0.000000e+00 : f32
    %129 = vector.broadcast %cst_34 : f32 to vector<2x1024xf32>
    %130 = arith.maximumf %128, %129 : vector<2x1024xf32>
    %131 = vector.broadcast %122 : f32 to vector<2x1024xf32>
    %132 = arith.mulf %131, %130 : vector<2x1024xf32>
    %133 = arith.addf %121, %132 : vector<2x1024xf32>
    %c11 = arith.constant 11 : index
    %134 = memref.load %arg4[%c11] : memref<20xf32, #tpu.memory_space<smem>>
    %c11_35 = arith.constant 11 : index
    %135 = memref.load %arg2[%c11_35] : memref<20xf32, #tpu.memory_space<smem>>
    %136 = vector.broadcast %135 : f32 to vector<2x1024xf32>
    %137 = arith.mulf %136, %0 : vector<2x1024xf32>
    %c11_36 = arith.constant 11 : index
    %138 = memref.load %arg3[%c11_36] : memref<20xf32, #tpu.memory_space<smem>>
    %139 = vector.broadcast %138 : f32 to vector<2x1024xf32>
    %140 = arith.addf %137, %139 : vector<2x1024xf32>
    %cst_37 = arith.constant 0.000000e+00 : f32
    %141 = vector.broadcast %cst_37 : f32 to vector<2x1024xf32>
    %142 = arith.maximumf %140, %141 : vector<2x1024xf32>
    %143 = vector.broadcast %134 : f32 to vector<2x1024xf32>
    %144 = arith.mulf %143, %142 : vector<2x1024xf32>
    %145 = arith.addf %133, %144 : vector<2x1024xf32>
    %c12 = arith.constant 12 : index
    %146 = memref.load %arg4[%c12] : memref<20xf32, #tpu.memory_space<smem>>
    %c12_38 = arith.constant 12 : index
    %147 = memref.load %arg2[%c12_38] : memref<20xf32, #tpu.memory_space<smem>>
    %148 = vector.broadcast %147 : f32 to vector<2x1024xf32>
    %149 = arith.mulf %148, %0 : vector<2x1024xf32>
    %c12_39 = arith.constant 12 : index
    %150 = memref.load %arg3[%c12_39] : memref<20xf32, #tpu.memory_space<smem>>
    %151 = vector.broadcast %150 : f32 to vector<2x1024xf32>
    %152 = arith.addf %149, %151 : vector<2x1024xf32>
    %cst_40 = arith.constant 0.000000e+00 : f32
    %153 = vector.broadcast %cst_40 : f32 to vector<2x1024xf32>
    %154 = arith.maximumf %152, %153 : vector<2x1024xf32>
    %155 = vector.broadcast %146 : f32 to vector<2x1024xf32>
    %156 = arith.mulf %155, %154 : vector<2x1024xf32>
    %157 = arith.addf %145, %156 : vector<2x1024xf32>
    %c13 = arith.constant 13 : index
    %158 = memref.load %arg4[%c13] : memref<20xf32, #tpu.memory_space<smem>>
    %c13_41 = arith.constant 13 : index
    %159 = memref.load %arg2[%c13_41] : memref<20xf32, #tpu.memory_space<smem>>
    %160 = vector.broadcast %159 : f32 to vector<2x1024xf32>
    %161 = arith.mulf %160, %0 : vector<2x1024xf32>
    %c13_42 = arith.constant 13 : index
    %162 = memref.load %arg3[%c13_42] : memref<20xf32, #tpu.memory_space<smem>>
    %163 = vector.broadcast %162 : f32 to vector<2x1024xf32>
    %164 = arith.addf %161, %163 : vector<2x1024xf32>
    %cst_43 = arith.constant 0.000000e+00 : f32
    %165 = vector.broadcast %cst_43 : f32 to vector<2x1024xf32>
    %166 = arith.maximumf %164, %165 : vector<2x1024xf32>
    %167 = vector.broadcast %158 : f32 to vector<2x1024xf32>
    %168 = arith.mulf %167, %166 : vector<2x1024xf32>
    %169 = arith.addf %157, %168 : vector<2x1024xf32>
    %c14 = arith.constant 14 : index
    %170 = memref.load %arg4[%c14] : memref<20xf32, #tpu.memory_space<smem>>
    %c14_44 = arith.constant 14 : index
    %171 = memref.load %arg2[%c14_44] : memref<20xf32, #tpu.memory_space<smem>>
    %172 = vector.broadcast %171 : f32 to vector<2x1024xf32>
    %173 = arith.mulf %172, %0 : vector<2x1024xf32>
    %c14_45 = arith.constant 14 : index
    %174 = memref.load %arg3[%c14_45] : memref<20xf32, #tpu.memory_space<smem>>
    %175 = vector.broadcast %174 : f32 to vector<2x1024xf32>
    %176 = arith.addf %173, %175 : vector<2x1024xf32>
    %cst_46 = arith.constant 0.000000e+00 : f32
    %177 = vector.broadcast %cst_46 : f32 to vector<2x1024xf32>
    %178 = arith.maximumf %176, %177 : vector<2x1024xf32>
    %179 = vector.broadcast %170 : f32 to vector<2x1024xf32>
    %180 = arith.mulf %179, %178 : vector<2x1024xf32>
    %181 = arith.addf %169, %180 : vector<2x1024xf32>
    %c15 = arith.constant 15 : index
    %182 = memref.load %arg4[%c15] : memref<20xf32, #tpu.memory_space<smem>>
    %c15_47 = arith.constant 15 : index
    %183 = memref.load %arg2[%c15_47] : memref<20xf32, #tpu.memory_space<smem>>
    %184 = vector.broadcast %183 : f32 to vector<2x1024xf32>
    %185 = arith.mulf %184, %0 : vector<2x1024xf32>
    %c15_48 = arith.constant 15 : index
    %186 = memref.load %arg3[%c15_48] : memref<20xf32, #tpu.memory_space<smem>>
    %187 = vector.broadcast %186 : f32 to vector<2x1024xf32>
    %188 = arith.addf %185, %187 : vector<2x1024xf32>
    %cst_49 = arith.constant 0.000000e+00 : f32
    %189 = vector.broadcast %cst_49 : f32 to vector<2x1024xf32>
    %190 = arith.maximumf %188, %189 : vector<2x1024xf32>
    %191 = vector.broadcast %182 : f32 to vector<2x1024xf32>
    %192 = arith.mulf %191, %190 : vector<2x1024xf32>
    %193 = arith.addf %181, %192 : vector<2x1024xf32>
    %c16 = arith.constant 16 : index
    %194 = memref.load %arg4[%c16] : memref<20xf32, #tpu.memory_space<smem>>
    %c16_50 = arith.constant 16 : index
    %195 = memref.load %arg2[%c16_50] : memref<20xf32, #tpu.memory_space<smem>>
    %196 = vector.broadcast %195 : f32 to vector<2x1024xf32>
    %197 = arith.mulf %196, %0 : vector<2x1024xf32>
    %c16_51 = arith.constant 16 : index
    %198 = memref.load %arg3[%c16_51] : memref<20xf32, #tpu.memory_space<smem>>
    %199 = vector.broadcast %198 : f32 to vector<2x1024xf32>
    %200 = arith.addf %197, %199 : vector<2x1024xf32>
    %cst_52 = arith.constant 0.000000e+00 : f32
    %201 = vector.broadcast %cst_52 : f32 to vector<2x1024xf32>
    %202 = arith.maximumf %200, %201 : vector<2x1024xf32>
    %203 = vector.broadcast %194 : f32 to vector<2x1024xf32>
    %204 = arith.mulf %203, %202 : vector<2x1024xf32>
    %205 = arith.addf %193, %204 : vector<2x1024xf32>
    %c17 = arith.constant 17 : index
    %206 = memref.load %arg4[%c17] : memref<20xf32, #tpu.memory_space<smem>>
    %c17_53 = arith.constant 17 : index
    %207 = memref.load %arg2[%c17_53] : memref<20xf32, #tpu.memory_space<smem>>
    %208 = vector.broadcast %207 : f32 to vector<2x1024xf32>
    %209 = arith.mulf %208, %0 : vector<2x1024xf32>
    %c17_54 = arith.constant 17 : index
    %210 = memref.load %arg3[%c17_54] : memref<20xf32, #tpu.memory_space<smem>>
    %211 = vector.broadcast %210 : f32 to vector<2x1024xf32>
    %212 = arith.addf %209, %211 : vector<2x1024xf32>
    %cst_55 = arith.constant 0.000000e+00 : f32
    %213 = vector.broadcast %cst_55 : f32 to vector<2x1024xf32>
    %214 = arith.maximumf %212, %213 : vector<2x1024xf32>
    %215 = vector.broadcast %206 : f32 to vector<2x1024xf32>
    %216 = arith.mulf %215, %214 : vector<2x1024xf32>
    %217 = arith.addf %205, %216 : vector<2x1024xf32>
    %c18 = arith.constant 18 : index
    %218 = memref.load %arg4[%c18] : memref<20xf32, #tpu.memory_space<smem>>
    %c18_56 = arith.constant 18 : index
    %219 = memref.load %arg2[%c18_56] : memref<20xf32, #tpu.memory_space<smem>>
    %220 = vector.broadcast %219 : f32 to vector<2x1024xf32>
    %221 = arith.mulf %220, %0 : vector<2x1024xf32>
    %c18_57 = arith.constant 18 : index
    %222 = memref.load %arg3[%c18_57] : memref<20xf32, #tpu.memory_space<smem>>
    %223 = vector.broadcast %222 : f32 to vector<2x1024xf32>
    %224 = arith.addf %221, %223 : vector<2x1024xf32>
    %cst_58 = arith.constant 0.000000e+00 : f32
    %225 = vector.broadcast %cst_58 : f32 to vector<2x1024xf32>
    %226 = arith.maximumf %224, %225 : vector<2x1024xf32>
    %227 = vector.broadcast %218 : f32 to vector<2x1024xf32>
    %228 = arith.mulf %227, %226 : vector<2x1024xf32>
    %229 = arith.addf %217, %228 : vector<2x1024xf32>
    %c19 = arith.constant 19 : index
    %230 = memref.load %arg4[%c19] : memref<20xf32, #tpu.memory_space<smem>>
    %c19_59 = arith.constant 19 : index
    %231 = memref.load %arg2[%c19_59] : memref<20xf32, #tpu.memory_space<smem>>
    %232 = vector.broadcast %231 : f32 to vector<2x1024xf32>
    %233 = arith.mulf %232, %0 : vector<2x1024xf32>
    %c19_60 = arith.constant 19 : index
    %234 = memref.load %arg3[%c19_60] : memref<20xf32, #tpu.memory_space<smem>>
    %235 = vector.broadcast %234 : f32 to vector<2x1024xf32>
    %236 = arith.addf %233, %235 : vector<2x1024xf32>
    %cst_61 = arith.constant 0.000000e+00 : f32
    %237 = vector.broadcast %cst_61 : f32 to vector<2x1024xf32>
    %238 = arith.maximumf %236, %237 : vector<2x1024xf32>
    %239 = vector.broadcast %230 : f32 to vector<2x1024xf32>
    %240 = arith.mulf %239, %238 : vector<2x1024xf32>
    %241 = arith.addf %229, %240 : vector<2x1024xf32>
    %c0_62 = arith.constant 0 : index
    %242 = memref.load %arg5[%c0_62] : memref<1xf32, #tpu.memory_space<smem>>
    %243 = vector.broadcast %242 : f32 to vector<2x1024xf32>
    %244 = arith.addf %241, %243 : vector<2x1024xf32>
    %c0_63 = arith.constant 0 : index
    %c0_64 = arith.constant 0 : index
    %245 = vector.load %arg6[%c0_63, %c0_64] : memref<2x1024xf32, #tpu.memory_space<vmem>>, vector<2x1024xf32>
    tpu.vector_store %arg6[%c0_63, %c0_64], %244 {strides = array<i32>} : memref<2x1024xf32, #tpu.memory_space<vmem>>, vector<2x1024xf32>,
    return
  }
  func.func @transform_0(%arg0: i32) -> (i32, i32) {
    %c0_i32 = arith.constant 0 : i32
    %c0_i32_0 = arith.constant 0 : i32
    return %arg0, %c0_i32 : i32, i32
  }
  func.func @transform_1(%arg0: i32) -> i32 {
    %c0_i32 = arith.constant 0 : i32
    %c0_i32_0 = arith.constant 0 : i32
    return %c0_i32 : i32
  }
  func.func @transform_2(%arg0: i32) -> i32 {
    %c0_i32 = arith.constant 0 : i32
    %c0_i32_0 = arith.constant 0 : i32
    return %c0_i32 : i32
  }
  func.func @transform_3(%arg0: i32) -> i32 {
    %c0_i32 = arith.constant 0 : i32
    %c0_i32_0 = arith.constant 0 : i32
    return %c0_i32 : i32
  }
  func.func @transform_4(%arg0: i32) -> i32 {
    %c0_i32 = arith.constant 0 : i32
    %c0_i32_0 = arith.constant 0 : i32
    return %c0_i32 : i32
  }
  func.func @transform_5(%arg0: i32) -> (i32, i32) {
    %c0_i32 = arith.constant 0 : i32
    %c0_i32_0 = arith.constant 0 : i32
    return %arg0, %c0_i32 : i32, i32
  }
}

</mosaic_0001>

<llo_original>
// kernel: tpu_custom_call.1
$region0: #{tpu_custom_call.1}
  #allocation0 [shape = 'u32[]', space=smem, size = 0x4, offset = 0x4, fixed_abs, tag = 'smem constant byte address 0x4 - core index']
  #allocation1 [shape = 'u32[144,128]{1,0:T(1,128)}', space=vmem, size = 0x12000, scoped, tag = 'internal scratch']
  #allocation2 [shape = 'f32[1]{0:T(128)S(6)}', space=smem, size = 0x200, scoped, tag = 'scoped memory for tpu_custom_call.1']
  %s0 = inlined_call_operand.hbm [shape: f32[2,1024], index: 0, kind: input, shape index: {}]
  %s1 = inlined_call_operand.vmem [shape: f32[20], index: 1, kind: input, shape index: {}]
  %s2 = inlined_call_operand.vmem [shape: f32[20], index: 2, kind: input, shape index: {}]
  %s3 = inlined_call_operand.vmem [shape: f32[20], index: 3, kind: input, shape index: {}]
  %s4 = inlined_call_operand.<no memory space> [shape: f32[1], index: 4, kind: input, shape index: {}]
  %s5 = inlined_call_operand.hbm [shape: f32[2,1024], index: 5, kind: output, shape index: {}]
  %s6 = sld [smem:[#allocation0]]
  $region46: #{tpu_custom_call.1} parent=0
    _
  %s8 = ssub.s32 1, %s6
  %s9 = scalar_select 0, %s8, %s6
  %10 = sst [smem:[#allocation2]] %s4
  $region1: #{tpu_custom_call.1} parent=0
    #allocation3 [shape = 'u8[8192]{0}', space=vmem, size = 0x2000, scoped, tag = 'input window, operand 0, single buffered']
    #allocation4 [shape = 's32[1]{0}', space=sflag, size = 0x4, scoped, tag = 'scoped memory for tpu_custom_call.1']
    #allocation5 [shape = 's32[1]{0}', space=sflag, size = 0x4, scoped, tag = 'scoped memory for tpu_custom_call.1']
    #allocation6 [shape = 's32[1]{0}', space=sflag, size = 0x4, scoped, tag = 'scoped memory for tpu_custom_call.1']
    #allocation7 [shape = 'u8[512]{0}', space=smem, size = 0x200, scoped, tag = 'input window, operand 1, single buffered']
    #allocation8 [shape = 'u8[512]{0}', space=smem, size = 0x200, scoped, tag = 'input window, operand 2, single buffered']
    #allocation9 [shape = 's32[1]{0}', space=sflag, size = 0x4, scoped, tag = 'scoped memory for tpu_custom_call.1']
    #allocation10 [shape = 'u8[512]{0}', space=smem, size = 0x200, scoped, tag = 'input window, operand 3, single buffered']
    #allocation11 [shape = 'u8[8192]{0}', space=vmem, size = 0x2000, scoped, tag = 'output window, operand 0, single buffered']
    %11 = vsyncpa [#allocation4], 0
    %12 = vsyncpa [#allocation6], 0
    %13 = vsyncpa [#allocation9], 0
    %14 = vsyncpa [#allocation5], 0
    // Predicated region
    $region2: #{tpu_custom_call.1} parent=1 // pred_check
      _
    $region3: #{tpu_custom_call.1} parent=1 // pred_check_branch
      %16 = sbr.rel (0) target = $region5
    $region4: #{tpu_custom_call.1} parent=1 // pred_region
      %s18 = ssub.s32 256, 256
      %19 = vsyncadd [#allocation4], %s18
      %s21 = sshll.u32 [#allocation3], 4
      %s22 = int_to_ptr.vmem [resolvable:$true] %s21
      %24 = dma.hbm_to_vmem [thread:$0]  %s0, 256, %s22, [#allocation4]
    $region5: #{tpu_custom_call.1} parent=1 // pred_fallthru
      _
    // Predicated region
    $region6: #{tpu_custom_call.1} parent=1 // pred_check
      _
    $region7: #{tpu_custom_call.1} parent=1 // pred_check_branch
      %26 = sbr.rel (0) target = $region9
    $region8: #{tpu_custom_call.1} parent=1 // pred_region
      %s28 = ssub.s32 16, 16
      %29 = vsyncadd [#allocation6], %s28
      %s31 = sshll.u32 %s1, 4
      %s32 = int_to_ptr.vmem [resolvable:$true] %s31
      %34 = dma.vmem_to_smem %s32, 16, [#allocation7], [#allocation6]
    $region9: #{tpu_custom_call.1} parent=1 // pred_fallthru
      _
    // Predicated region
    $region10: #{tpu_custom_call.1} parent=1 // pred_check
      _
    $region11: #{tpu_custom_call.1} parent=1 // pred_check_branch
      %36 = sbr.rel (0) target = $region13
    $region12: #{tpu_custom_call.1} parent=1 // pred_region
      %s38 = ssub.s32 16, 16
      %39 = vsyncadd [#allocation9], %s38
      %s41 = sshll.u32 %s2, 4
      %s42 = int_to_ptr.vmem [resolvable:$true] %s41
      %44 = dma.vmem_to_smem %s42, 16, [#allocation8], [#allocation9]
    $region13: #{tpu_custom_call.1} parent=1 // pred_fallthru
      _
    // Predicated region
    $region14: #{tpu_custom_call.1} parent=1 // pred_check
      _
    $region15: #{tpu_custom_call.1} parent=1 // pred_check_branch
      %46 = sbr.rel (0) target = $region17
    $region16: #{tpu_custom_call.1} parent=1 // pred_region
      %s48 = ssub.s32 16, 16
      %49 = vsyncadd [#allocation9], %s48
      %s51 = sshll.u32 %s3, 4
      %s52 = int_to_ptr.vmem [resolvable:$true] %s51
      %54 = dma.vmem_to_smem %s52, 16, [#allocation10], [#allocation9]
    $region17: #{tpu_custom_call.1} parent=1 // pred_fallthru
      _
    // Predicated region
    $region18: #{tpu_custom_call.1} parent=1 // pred_check
      _
    $region19: #{tpu_custom_call.1} parent=1 // pred_check_branch
      %56 = sbr.rel (0) target = $region21
    $region20: #{tpu_custom_call.1} parent=1 // pred_region
      _
    $region21: #{tpu_custom_call.1} parent=1 // pred_fallthru
      _
    // Predicated region
    $region22: #{tpu_custom_call.1} parent=1 // pred_check
      _
    $region23: #{tpu_custom_call.1} parent=1 // pred_check_branch
      %58 = sbr.rel (0) target = $region25
    $region24: #{tpu_custom_call.1} parent=1 // pred_region
      %59 = dma.done [#allocation4], 256
    $region25: #{tpu_custom_call.1} parent=1 // pred_fallthru
      _
    // Predicated region
    $region26: #{tpu_custom_call.1} parent=1 // pred_check
      _
    $region27: #{tpu_custom_call.1} parent=1 // pred_check_branch
      %61 = sbr.rel (0) target = $region29
    $region28: #{tpu_custom_call.1} parent=1 // pred_region
      %62 = dma.done [#allocation6], 16
    $region29: #{tpu_custom_call.1} parent=1 // pred_fallthru
      _
    // Predicated region
    $region30: #{tpu_custom_call.1} parent=1 // pred_check
      _
    $region31: #{tpu_custom_call.1} parent=1 // pred_check_branch
      %64 = sbr.rel (0) target = $region33
    $region32: #{tpu_custom_call.1} parent=1 // pred_region
      %65 = dma.done [#allocation9], 16
    $region33: #{tpu_custom_call.1} parent=1 // pred_fallthru
      _
    // Predicated region
    $region34: #{tpu_custom_call.1} parent=1 // pred_check
      _
    $region35: #{tpu_custom_call.1} parent=1 // pred_check_branch
      %67 = sbr.rel (0) target = $region37
    $region36: #{tpu_custom_call.1} parent=1 // pred_region
      %68 = dma.done [#allocation9], 16
    $region37: #{tpu_custom_call.1} parent=1 // pred_fallthru
      _
    %69 = sfence
    %v70 = vld [vmem:[#allocation3] sm:$0xff]
    %v71 = vld [vmem:[#allocation3 + $0x8] sm:$0xff]
    %s72 = sld [smem:[#allocation10]]
    %s73 = sld [smem:[#allocation7]]
    %v74 = vstv %s73
    %v75 = vmul.f32 %v74, %v70
    %v76 = vmul.f32 %v74, %v71
    %s77 = sld [smem:[#allocation8]]
    %v78 = vstv %s77
    %v79 = vadd.f32 %v75, %v78
    %v80 = vadd.f32 %v76, %v78
    %v81 = vmax.f32 %v79, 0.0
    %v82 = vmax.f32 %v80, 0.0
    %v83 = vstv %s72
    %v84 = vmul.f32 %v83, %v81
    %v85 = vmul.f32 %v83, %v82
    %v86 = vadd.f32 %v84, 0.0
    %v87 = vadd.f32 %v85, 0.0
    %s88 = sld [smem:[#allocation10 + $0x1]]
    %s89 = sld [smem:[#allocation7 + $0x1]]
    %v90 = vstv %s89
    %v91 = vmul.f32 %v90, %v70
    %v92 = vmul.f32 %v90, %v71
    %s93 = sld [smem:[#allocation8 + $0x1]]
    %v94 = vstv %s93
    %v95 = vadd.f32 %v91, %v94
    %v96 = vadd.f32 %v92, %v94
    %v97 = vmax.f32 %v95, 0.0
    %v98 = vmax.f32 %v96, 0.0
    %v99 = vstv %s88
    %v100 = vmul.f32 %v99, %v97
    %v101 = vmul.f32 %v99, %v98
    %v102 = vadd.f32 %v86, %v100
    %v103 = vadd.f32 %v87, %v101
    %s104 = sld [smem:[#allocation10 + $0x2]]
    %s105 = sld [smem:[#allocation7 + $0x2]]
    %v106 = vstv %s105
    %v107 = vmul.f32 %v106, %v70
    %v108 = vmul.f32 %v106, %v71
    %s109 = sld [smem:[#allocation8 + $0x2]]
    %v110 = vstv %s109
    %v111 = vadd.f32 %v107, %v110
    %v112 = vadd.f32 %v108, %v110
    %v113 = vmax.f32 %v111, 0.0
    %v114 = vmax.f32 %v112, 0.0
    %v115 = vstv %s104
    %v116 = vmul.f32 %v115, %v113
    %v117 = vmul.f32 %v115, %v114
    %v118 = vadd.f32 %v102, %v116
    %v119 = vadd.f32 %v103, %v117
    %s120 = sld [smem:[#allocation10 + $0x3]]
    %s121 = sld [smem:[#allocation7 + $0x3]]
    %v122 = vstv %s121
    %v123 = vmul.f32 %v122, %v70
    %v124 = vmul.f32 %v122, %v71
    %s125 = sld [smem:[#allocation8 + $0x3]]
    %v126 = vstv %s125
    %v127 = vadd.f32 %v123, %v126
    %v128 = vadd.f32 %v124, %v126
    %v129 = vmax.f32 %v127, 0.0
    %v130 = vmax.f32 %v128, 0.0
    %v131 = vstv %s120
    %v132 = vmul.f32 %v131, %v129
    %v133 = vmul.f32 %v131, %v130
    %v134 = vadd.f32 %v118, %v132
    %v135 = vadd.f32 %v119, %v133
    %s136 = sld [smem:[#allocation10 + $0x4]]
    %s137 = sld [smem:[#allocation7 + $0x4]]
    %v138 = vstv %s137
    %v139 = vmul.f32 %v138, %v70
    %v140 = vmul.f32 %v138, %v71
    %s141 = sld [smem:[#allocation8 + $0x4]]
    %v142 = vstv %s141
    %v143 = vadd.f32 %v139, %v142
    %v144 = vadd.f32 %v140, %v142
    %v145 = vmax.f32 %v143, 0.0
    %v146 = vmax.f32 %v144, 0.0
    %v147 = vstv %s136
    %v148 = vmul.f32 %v147, %v145
    %v149 = vmul.f32 %v147, %v146
    %v150 = vadd.f32 %v134, %v148
    %v151 = vadd.f32 %v135, %v149
    %s152 = sld [smem:[#allocation10 + $0x5]]
    %s153 = sld [smem:[#allocation7 + $0x5]]
    %v154 = vstv %s153
    %v155 = vmul.f32 %v154, %v70
    %v156 = vmul.f32 %v154, %v71
    %s157 = sld [smem:[#allocation8 + $0x5]]
    %v158 = vstv %s157
    %v159 = vadd.f32 %v155, %v158
    %v160 = vadd.f32 %v156, %v158
    %v161 = vmax.f32 %v159, 0.0
    %v162 = vmax.f32 %v160, 0.0
    %v163 = vstv %s152
    %v164 = vmul.f32 %v163, %v161
    %v165 = vmul.f32 %v163, %v162
    %v166 = vadd.f32 %v150, %v164
    %v167 = vadd.f32 %v151, %v165
    %s168 = sld [smem:[#allocation10 + $0x6]]
    %s169 = sld [smem:[#allocation7 + $0x6]]
    %v170 = vstv %s169
    %v171 = vmul.f32 %v170, %v70
    %v172 = vmul.f32 %v170, %v71
    %s173 = sld [smem:[#allocation8 + $0x6]]
    %v174 = vstv %s173
    %v175 = vadd.f32 %v171, %v174
    %v176 = vadd.f32 %v172, %v174
    %v177 = vmax.f32 %v175, 0.0
    %v178 = vmax.f32 %v176, 0.0
    %v179 = vstv %s168
    %v180 = vmul.f32 %v179, %v177
    %v181 = vmul.f32 %v179, %v178
    %v182 = vadd.f32 %v166, %v180
    %v183 = vadd.f32 %v167, %v181
    %s184 = sld [smem:[#allocation10 + $0x7]]
    %s185 = sld [smem:[#allocation7 + $0x7]]
    %v186 = vstv %s185
    %v187 = vmul.f32 %v186, %v70
    %v188 = vmul.f32 %v186, %v71
    %s189 = sld [smem:[#allocation8 + $0x7]]
    %v190 = vstv %s189
    %v191 = vadd.f32 %v187, %v190
    %v192 = vadd.f32 %v188, %v190
    %v193 = vmax.f32 %v191, 0.0
    %v194 = vmax.f32 %v192, 0.0
    %v195 = vstv %s184
    %v196 = vmul.f32 %v195, %v193
    %v197 = vmul.f32 %v195, %v194
    %v198 = vadd.f32 %v182, %v196
    %v199 = vadd.f32 %v183, %v197
    %s200 = sld [smem:[#allocation10 + $0x8]]
    %s201 = sld [smem:[#allocation7 + $0x8]]
    %v202 = vstv %s201
    %v203 = vmul.f32 %v202, %v70
    %v204 = vmul.f32 %v202, %v71
    %s205 = sld [smem:[#allocation8 + $0x8]]
    %v206 = vstv %s205
    %v207 = vadd.f32 %v203, %v206
    %v208 = vadd.f32 %v204, %v206
    %v209 = vmax.f32 %v207, 0.0
    %v210 = vmax.f32 %v208, 0.0
    %v211 = vstv %s200
    %v212 = vmul.f32 %v211, %v209
    %v213 = vmul.f32 %v211, %v210
    %v214 = vadd.f32 %v198, %v212
    %v215 = vadd.f32 %v199, %v213
    %s216 = sld [smem:[#allocation10 + $0x9]]
    %s217 = sld [smem:[#allocation7 + $0x9]]
    %v218 = vstv %s217
    %v219 = vmul.f32 %v218, %v70
    %v220 = vmul.f32 %v218, %v71
    %s221 = sld [smem:[#allocation8 + $0x9]]
    %v222 = vstv %s221
    %v223 = vadd.f32 %v219, %v222
    %v224 = vadd.f32 %v220, %v222
    %v225 = vmax.f32 %v223, 0.0
    %v226 = vmax.f32 %v224, 0.0
    %v227 = vstv %s216
    %v228 = vmul.f32 %v227, %v225
    %v229 = vmul.f32 %v227, %v226
    %v230 = vadd.f32 %v214, %v228
    %v231 = vadd.f32 %v215, %v229
    %s232 = sld [smem:[#allocation10 + $0xa]]
    %s233 = sld [smem:[#allocation7 + $0xa]]
    %v234 = vstv %s233
    %v235 = vmul.f32 %v234, %v70
    %v236 = vmul.f32 %v234, %v71
    %s237 = sld [smem:[#allocation8 + $0xa]]
    %v238 = vstv %s237
    %v239 = vadd.f32 %v235, %v238
    %v240 = vadd.f32 %v236, %v238
    %v241 = vmax.f32 %v239, 0.0
    %v242 = vmax.f32 %v240, 0.0
    %v243 = vstv %s232
    %v244 = vmul.f32 %v243, %v241
    %v245 = vmul.f32 %v243, %v242
    %v246 = vadd.f32 %v230, %v244
    %v247 = vadd.f32 %v231, %v245
    %s248 = sld [smem:[#allocation10 + $0xb]]
    %s249 = sld [smem:[#allocation7 + $0xb]]
    %v250 = vstv %s249
    %v251 = vmul.f32 %v250, %v70
    %v252 = vmul.f32 %v250, %v71
    %s253 = sld [smem:[#allocation8 + $0xb]]
    %v254 = vstv %s253
    %v255 = vadd.f32 %v251, %v254
    %v256 = vadd.f32 %v252, %v254
    %v257 = vmax.f32 %v255, 0.0
    %v258 = vmax.f32 %v256, 0.0
    %v259 = vstv %s248
    %v260 = vmul.f32 %v259, %v257
    %v261 = vmul.f32 %v259, %v258
    %v262 = vadd.f32 %v246, %v260
    %v263 = vadd.f32 %v247, %v261
    %s264 = sld [smem:[#allocation10 + $0xc]]
    %s265 = sld [smem:[#allocation7 + $0xc]]
    %v266 = vstv %s265
    %v267 = vmul.f32 %v266, %v70
    %v268 = vmul.f32 %v266, %v71
    %s269 = sld [smem:[#allocation8 + $0xc]]
    %v270 = vstv %s269
    %v271 = vadd.f32 %v267, %v270
    %v272 = vadd.f32 %v268, %v270
    %v273 = vmax.f32 %v271, 0.0
    %v274 = vmax.f32 %v272, 0.0
    %v275 = vstv %s264
    %v276 = vmul.f32 %v275, %v273
    %v277 = vmul.f32 %v275, %v274
    %v278 = vadd.f32 %v262, %v276
    %v279 = vadd.f32 %v263, %v277
    %s280 = sld [smem:[#allocation10 + $0xd]]
    %s281 = sld [smem:[#allocation7 + $0xd]]
    %v282 = vstv %s281
    %v283 = vmul.f32 %v282, %v70
    %v284 = vmul.f32 %v282, %v71
    %s285 = sld [smem:[#allocation8 + $0xd]]
    %v286 = vstv %s285
    %v287 = vadd.f32 %v283, %v286
    %v288 = vadd.f32 %v284, %v286
    %v289 = vmax.f32 %v287, 0.0
    %v290 = vmax.f32 %v288, 0.0
    %v291 = vstv %s280
    %v292 = vmul.f32 %v291, %v289
    %v293 = vmul.f32 %v291, %v290
    %v294 = vadd.f32 %v278, %v292
    %v295 = vadd.f32 %v279, %v293
    %s296 = sld [smem:[#allocation10 + $0xe]]
    %s297 = sld [smem:[#allocation7 + $0xe]]
    %v298 = vstv %s297
    %v299 = vmul.f32 %v298, %v70
    %v300 = vmul.f32 %v298, %v71
    %s301 = sld [smem:[#allocation8 + $0xe]]
    %v302 = vstv %s301
    %v303 = vadd.f32 %v299, %v302
    %v304 = vadd.f32 %v300, %v302
    %v305 = vmax.f32 %v303, 0.0
    %v306 = vmax.f32 %v304, 0.0
    %v307 = vstv %s296
    %v308 = vmul.f32 %v307, %v305
    %v309 = vmul.f32 %v307, %v306
    %v310 = vadd.f32 %v294, %v308
    %v311 = vadd.f32 %v295, %v309
    %s312 = sld [smem:[#allocation10 + $0xf]]
    %s313 = sld [smem:[#allocation7 + $0xf]]
    %v314 = vstv %s313
    %v315 = vmul.f32 %v314, %v70
    %v316 = vmul.f32 %v314, %v71
    %s317 = sld [smem:[#allocation8 + $0xf]]
    %v318 = vstv %s317
    %v319 = vadd.f32 %v315, %v318
    %v320 = vadd.f32 %v316, %v318
    %v321 = vmax.f32 %v319, 0.0
    %v322 = vmax.f32 %v320, 0.0
    %v323 = vstv %s312
    %v324 = vmul.f32 %v323, %v321
    %v325 = vmul.f32 %v323, %v322
    %v326 = vadd.f32 %v310, %v324
    %v327 = vadd.f32 %v311, %v325
    %s328 = sld [smem:[#allocation10 + $0x10]]
    %s329 = sld [smem:[#allocation7 + $0x10]]
    %v330 = vstv %s329
    %v331 = vmul.f32 %v330, %v70
    %v332 = vmul.f32 %v330, %v71
    %s333 = sld [smem:[#allocation8 + $0x10]]
    %v334 = vstv %s333
    %v335 = vadd.f32 %v331, %v334
    %v336 = vadd.f32 %v332, %v334
    %v337 = vmax.f32 %v335, 0.0
    %v338 = vmax.f32 %v336, 0.0
    %v339 = vstv %s328
    %v340 = vmul.f32 %v339, %v337
    %v341 = vmul.f32 %v339, %v338
    %v342 = vadd.f32 %v326, %v340
    %v343 = vadd.f32 %v327, %v341
    %s344 = sld [smem:[#allocation10 + $0x11]]
    %s345 = sld [smem:[#allocation7 + $0x11]]
    %v346 = vstv %s345
    %v347 = vmul.f32 %v346, %v70
    %v348 = vmul.f32 %v346, %v71
    %s349 = sld [smem:[#allocation8 + $0x11]]
    %v350 = vstv %s349
    %v351 = vadd.f32 %v347, %v350
    %v352 = vadd.f32 %v348, %v350
    %v353 = vmax.f32 %v351, 0.0
    %v354 = vmax.f32 %v352, 0.0
    %v355 = vstv %s344
    %v356 = vmul.f32 %v355, %v353
    %v357 = vmul.f32 %v355, %v354
    %v358 = vadd.f32 %v342, %v356
    %v359 = vadd.f32 %v343, %v357
    %s360 = sld [smem:[#allocation10 + $0x12]]
    %s361 = sld [smem:[#allocation7 + $0x12]]
    %v362 = vstv %s361
    %v363 = vmul.f32 %v362, %v70
    %v364 = vmul.f32 %v362, %v71
    %s365 = sld [smem:[#allocation8 + $0x12]]
    %v366 = vstv %s365
    %v367 = vadd.f32 %v363, %v366
    %v368 = vadd.f32 %v364, %v366
    %v369 = vmax.f32 %v367, 0.0
    %v370 = vmax.f32 %v368, 0.0
    %v371 = vstv %s360
    %v372 = vmul.f32 %v371, %v369
    %v373 = vmul.f32 %v371, %v370
    %v374 = vadd.f32 %v358, %v372
    %v375 = vadd.f32 %v359, %v373
    %s376 = sld [smem:[#allocation10 + $0x13]]
    %s377 = sld [smem:[#allocation7 + $0x13]]
    %v378 = vstv %s377
    %v379 = vmul.f32 %v378, %v70
    %v380 = vmul.f32 %v378, %v71
    %s381 = sld [smem:[#allocation8 + $0x13]]
    %v382 = vstv %s381
    %v383 = vadd.f32 %v379, %v382
    %v384 = vadd.f32 %v380, %v382
    %v385 = vmax.f32 %v383, 0.0
    %v386 = vmax.f32 %v384, 0.0
    %v387 = vstv %s376
    %v388 = vmul.f32 %v387, %v385
    %v389 = vmul.f32 %v387, %v386
    %v390 = vadd.f32 %v374, %v388
    %v391 = vadd.f32 %v375, %v389
    %s392 = sld [smem:[#allocation2]]
    %v393 = vstv %s392
    %v394 = vadd.f32 %v390, %v393
    %v395 = vadd.f32 %v391, %v393
    %396 = vst [vmem:[#allocation11] sm:$0xff] %v394
    %397 = vst [vmem:[#allocation11 + $0x8] sm:$0xff] %v395
    // Predicated region
    $region38: #{tpu_custom_call.1} parent=1 // pred_check
      _
    $region39: #{tpu_custom_call.1} parent=1 // pred_check_branch
      %399 = sbr.rel (0) target = $region41
    $region40: #{tpu_custom_call.1} parent=1 // pred_region
      %s401 = ssub.s32 256, 256
      %402 = vsyncadd [#allocation5], %s401
      %s404 = sshll.u32 [#allocation11], 4
      %s405 = int_to_ptr.vmem [resolvable:$true] %s404
      %407 = dma.vmem_to_hbm [thread:$0]  %s405, 256, %s5, [#allocation5]
    $region41: #{tpu_custom_call.1} parent=1 // pred_fallthru
      _
    // Predicated region
    $region42: #{tpu_custom_call.1} parent=1 // pred_check
      _
    $region43: #{tpu_custom_call.1} parent=1 // pred_check_branch
      %409 = sbr.rel (0) target = $region45
    $region44: #{tpu_custom_call.1} parent=1 // pred_region
      %410 = dma.done [#allocation5], 256
    $region45: #{tpu_custom_call.1} parent=1 // pred_fallthru
      _
    %411 = vsyncpa [#allocation4], 1
    %412 = vsyncpa [#allocation5], 1
    %413 = vsyncpa [#allocation6], 1
    %414 = vsyncpa [#allocation9], 1

</llo_original>
